<compile_context>
chip_gen: v7x
topology: tpu7x:2x2x1
jax: 0.10.0
libtpu: 0.0.40
codegen_flags: <defaults>
</compile_context>

<pallas_src>
import jax
import jax.numpy as jnp
from jax.experimental import pallas as pl
from jax.experimental.pallas import tpu as pltpu


def _round_up(x: int, m: int) -> int:
    return (x + m - 1) // m * m


def _make_gem_kernel(eps: float, s_true: int, needs_mask: bool):
    inv_s = 1.0 / float(s_true)

    def gem_kernel(p_ref, x_ref, o_ref, acc_ref):
        # p_ref   : (1,) f32 scalar-prefetch ref in SMEM (learnable exponent p)
        # x_ref   : (TR, TS) input tile in VMEM
        # o_ref   : (TR, 1) output tile in VMEM (same block across the k axis)
        # acc_ref : (TR, 1) f32 running sum scratch (persists across k)
        k = pl.program_id(1)
        nk = pl.num_programs(1)

        @pl.when(k == 0)
        def _():
            acc_ref[...] = jnp.zeros_like(acc_ref)

        p = p_ref[0]
        x = x_ref[...].astype(jnp.float32)
        # clamp(min=eps, max=1.0)  (matches the PyTorch module's clamp exactly)
        xc = jnp.clip(x, eps, 1.0)
        # x^p with x > 0 after clamp and learnable (non-integer) p.
        xp = jnp.exp(p * jnp.log(xc))

        if needs_mask:
            # Zero the padded spatial lanes so they don't bias the mean.
            tr, ts = x_ref.shape
            col = jax.lax.broadcasted_iota(jnp.int32, (tr, ts), 1) + k * ts
            xp = jnp.where(col < s_true, xp, 0.0)

        acc_ref[...] += jnp.sum(xp, axis=-1, keepdims=True)

        @pl.when(k == nk - 1)
        def _():
            mean = acc_ref[...] * inv_s          # divide by the TRUE spatial size
            inv_p = 1.0 / p                      # one scalar divide per tile
            y = jnp.exp(jnp.log(mean) * inv_p)   # mean^(1/p)
            o_ref[...] = y.astype(o_ref.dtype)

    return gem_kernel


def gem_pool(
    x: jax.Array,
    p: jax.Array,
    eps: float = 1e-6,
    *,
    ts_cap: int = 2048,          # max spatial tile width (multiple of 128)
    tr_cap: int = 1024,          # max row tile height (multiple of 8)
    vmem_elem_budget: int = 1 << 20,  # ~4 MiB f32 per tile, x2 double-buffer = 8 MiB
) -> jax.Array:
    """GeM pooling. x: (B, C, H, W); p: shape (1,) learnable exponent.

    Returns (B, C, 1, 1), matching the PyTorch module's forward output.
    """
    B, C, H, W = x.shape
    R, S = B * C, H * W
    x2d = x.reshape(R, S)

    # --- spatial (lane / reduction) tiling ---
    if S <= ts_cap:
        # Full-extent spatial block: no (…,128) divisibility requirement,
        # no padding, no masking, single reduction step.
        TS = S
        S_pad = S
    else:
        TS = ts_cap
        S_pad = _round_up(S, TS)
    grid_k = S_pad // TS
    needs_mask = S_pad != S

    # --- row (sublane / parallel) tiling ---
    tr_budget = max(8, (vmem_elem_budget // max(TS, 1)) // 8 * 8)
    TR = min(_round_up(R, 8), tr_cap, tr_budget)
    R_pad = _round_up(R, TR)
    grid_r = R_pad // TR

    if (R_pad, S_pad) != (R, S):
        # Zero padding; padded rows are sliced off, padded cols are masked.
        x2d = jnp.pad(x2d, ((0, R_pad - R), (0, S_pad - S)))

    kernel = _make_gem_kernel(float(eps), S, needs_mask)

    out2d = pl.pallas_call(
        kernel,
        out_shape=jax.ShapeDtypeStruct((R_pad, 1), x.dtype),
        grid_spec=pltpu.PrefetchScalarGridSpec(
            num_scalar_prefetch=1,  # p lands in SMEM
            grid=(grid_r, grid_k),  # rows parallel, spatial reduction last
            in_specs=[
                pl.BlockSpec((TR, TS), lambda i, k, p_ref: (i, k)),
            ],
            out_specs=pl.BlockSpec((TR, 1), lambda i, k, p_ref: (i, 0)),
            scratch_shapes=[pltpu.VMEM((TR, 1), jnp.float32)],
        ),
        compiler_params=pltpu.CompilerParams(
            dimension_semantics=("parallel", "arbitrary"),
            vmem_limit_bytes=32 * 1024 * 1024,
        ),
    )(p.astype(jnp.float32).reshape(1), x2d)

    return out2d[:R].reshape(B, C, 1, 1)


def gem_ref(x, p, eps=1e-6):
    """Pure-JAX reference (mirrors the PyTorch forward: clamp(eps, 1.0))."""
    xc = jnp.clip(x, eps, 1.0)
    xp = xc ** p[0]
    pooled = jnp.mean(xp, axis=(-2, -1), keepdims=True)
    return pooled ** (1.0 / p[0])


def _check(x, p, eps, **kw):
    out = jax.block_until_ready(gem_pool(x, p, eps, **kw))
    ref = gem_ref(x, p, eps)
    assert out.shape == ref.shape, (out.shape, ref.shape)
    err = float(jnp.max(jnp.abs(out.astype(jnp.float32) - ref.astype(jnp.float32))))
    assert jnp.allclose(out, ref, atol=1e-5, rtol=1e-5), err
    return out


if __name__ == "__main__":
    key = jax.random.PRNGKey(0)
    k0, k1, k2 = jax.random.split(key, 3)

    # Deterministic parameter init, matching nn.Parameter(torch.ones(1) * config.p)
    # with config.p = 3.0, config.eps = 1e-6
    p = jnp.ones((1,), dtype=jnp.float32) * 3.0
    eps = 1e-6

    # Primary case: B=2, C=4, H=W=16 (single-block fast path, S multiple of 128).
    x = jax.random.uniform(k0, (2, 4, 16, 16), dtype=jnp.float32)
    out = _check(x, p, eps)
    assert out.shape == (2, 4, 1, 1), out.shape

    # Non-lane-aligned spatial size (7x7=49) + row padding (R=6 -> TR=8).
    x2 = jax.random.uniform(k1, (2, 3, 7, 7), dtype=jnp.float32)
    _check(x2, p, eps)

    # Exercise the tiled-S reduction path with masking (S=200, TS=128 -> 2 steps).
    x3 = jax.random.uniform(k2, (2, 4, 10, 20), dtype=jnp.float32)
    _check(x3, p, eps, ts_cap=128)

    print("KERNEL_OK")
</pallas_src>

<mosaic_0001>
module attributes {stable_mosaic.version = 11 : i64} {
  func.func @gem_kernel(%arg0: i32, %arg1: i32, %arg2: memref<1xf32, #tpu.memory_space<smem>>, %arg3: memref<8x256xf32, #tpu.memory_space<vmem>>, %arg4: memref<8x1xf32, #tpu.memory_space<vmem>>, %arg5: memref<8x1xf32, #tpu.memory_space<vmem>>) attributes {dimension_semantics = [#tpu.dimension_semantics<parallel>, #tpu.dimension_semantics<arbitrary>], iteration_bounds = array<i64: 1, 1>, scalar_prefetch = 1 : i64, scratch_operands = 1 : i64, tpu.core_type = #tpu.core_type<tc>, window_params = [{transform_indices = @transform_0, window_bounds = array<i64: 8, 256>}, {transform_indices = @transform_1, window_bounds = array<i64: 8, 1>}]} {
    %c0_i32 = arith.constant 0 : i32
    %0 = arith.cmpi eq, %arg1, %c0_i32 : i32
    %1 = arith.extui %0 : i1 to i32
    %c0_i32_0 = arith.constant 0 : i32
    %2 = arith.cmpi ne, %1, %c0_i32_0 : i32
    scf.if %2 {
      %cst_11 = arith.constant 0.000000e+00 : f32
      %21 = vector.broadcast %cst_11 : f32 to vector<8x1xf32>
      %c0_12 = arith.constant 0 : index
      %c0_13 = arith.constant 0 : index
      %22 = vector.load %arg5[%c0_12, %c0_13] : memref<8x1xf32, #tpu.memory_space<vmem>>, vector<8x1xf32>
      tpu.vector_store %arg5[%c0_12, %c0_13], %21 {strides = array<i32>} : memref<8x1xf32, #tpu.memory_space<vmem>>, vector<8x1xf32>,
    } else {
    }
    %c0 = arith.constant 0 : index
    %3 = memref.load %arg2[%c0] : memref<1xf32, #tpu.memory_space<smem>>
    %c0_1 = arith.constant 0 : index
    %c0_2 = arith.constant 0 : index
    %4 = vector.load %arg3[%c0_1, %c0_2] : memref<8x256xf32, #tpu.memory_space<vmem>>, vector<8x256xf32>
    %cst = arith.constant 9.99999997E-7 : f32
    %cst_3 = arith.constant 1.000000e+00 : f32
    %5 = vector.broadcast %cst : f32 to vector<8x256xf32>
    %6 = arith.maximumf %5, %4 : vector<8x256xf32>
    %7 = vector.broadcast %cst_3 : f32 to vector<8x256xf32>
    %8 = arith.minimumf %7, %6 : vector<8x256xf32>
    %9 = math.log %8 : vector<8x256xf32>
    %10 = vector.broadcast %3 : f32 to vector<8x256xf32>
    %11 = arith.mulf %10, %9 : vector<8x256xf32>
    %12 = math.exp %11 : vector<8x256xf32>
    %c0_4 = arith.constant 0 : index
    %c0_5 = arith.constant 0 : index
    %13 = vector.load %arg5[%c0_4, %c0_5] : memref<8x1xf32, #tpu.memory_space<vmem>>, vector<8x1xf32>
    %cst_6 = arith.constant dense<0.000000e+00> : vector<8xf32>
    %14 = vector.multi_reduction <add>, %12, %cst_6 [1] : vector<8x256xf32> to vector<8xf32>
    %15 = vector.shape_cast %14 : vector<8xf32> to vector<8x1xf32>
    %16 = arith.addf %13, %15 : vector<8x1xf32>
    %c0_7 = arith.constant 0 : index
    %c0_8 = arith.constant 0 : index
    %17 = vector.load %arg5[%c0_7, %c0_8] : memref<8x1xf32, #tpu.memory_space<vmem>>, vector<8x1xf32>
    tpu.vector_store %arg5[%c0_7, %c0_8], %16 {strides = array<i32>} : memref<8x1xf32, #tpu.memory_space<vmem>>, vector<8x1xf32>,
    %c0_i32_9 = arith.constant 0 : i32
    %18 = arith.cmpi eq, %arg1, %c0_i32_9 : i32
    %19 = arith.extui %18 : i1 to i32
    %c0_i32_10 = arith.constant 0 : i32
    %20 = arith.cmpi ne, %19, %c0_i32_10 : i32
    scf.if %20 {
      %c0_11 = arith.constant 0 : index
      %c0_12 = arith.constant 0 : index
      %21 = vector.load %arg5[%c0_11, %c0_12] : memref<8x1xf32, #tpu.memory_space<vmem>>, vector<8x1xf32>
      %cst_13 = arith.constant 3.906250e-03 : f32
      %22 = vector.broadcast %cst_13 : f32 to vector<8x1xf32>
      %23 = arith.mulf %21, %22 : vector<8x1xf32>
      %cst_14 = arith.constant 1.000000e+00 : f32
      %24 = arith.divf %cst_14, %3 : f32
      %25 = math.log %23 : vector<8x1xf32>
      %26 = vector.broadcast %24 : f32 to vector<8x1xf32>
      %27 = arith.mulf %25, %26 : vector<8x1xf32>
      %28 = math.exp %27 : vector<8x1xf32>
      %c0_15 = arith.constant 0 : index
      %c0_16 = arith.constant 0 : index
      %29 = vector.load %arg4[%c0_15, %c0_16] : memref<8x1xf32, #tpu.memory_space<vmem>>, vector<8x1xf32>
      tpu.vector_store %arg4[%c0_15, %c0_16], %28 {strides = array<i32>} : memref<8x1xf32, #tpu.memory_space<vmem>>, vector<8x1xf32>,
    } else {
    }
    return
  }
  func.func @transform_0(%arg0: i32, %arg1: i32, %arg2: memref<1xf32, #tpu.memory_space<smem>>) -> (i32, i32) {
    %c0_i32 = arith.constant 0 : i32
    return %arg0, %arg1 : i32, i32
  }
  func.func @transform_1(%arg0: i32, %arg1: i32, %arg2: memref<1xf32, #tpu.memory_space<smem>>) -> (i32, i32) {
    %c0_i32 = arith.constant 0 : i32
    %c0_i32_0 = arith.constant 0 : i32
    return %arg0, %c0_i32 : i32, i32
  }
}

</mosaic_0001>

<llo_original>
// kernel: tpu_custom_call.1
$region0: #{tpu_custom_call.1}
  #allocation0 [shape = 'u32[]', space=smem, size = 0x4, offset = 0x4, fixed_abs, tag = 'smem constant byte address 0x4 - core index']
  #allocation1 [shape = 'u32[144,128]{1,0:T(1,128)}', space=vmem, size = 0x12000, scoped, tag = 'internal scratch']
  #allocation2 [shape = 'f32[8,1]{1,0:T(8,128)}', space=vmem, size = 0x1000, scoped, tag = 'scratch operand']
  #allocation3 [shape = 's32[1]{0}', space=sflag, size = 0x4, scoped, tag = 'scoped memory for tpu_custom_call.1']
  #allocation4 [shape = 'f32[1]{0:T(128)S(6)}', space=smem, size = 0x200, scoped, tag = 'prefetched SMEM operand 0']
  %s0 = inlined_call_operand.<no memory space> [shape: f32[1], index: 0, kind: input, shape index: {}]
  %s1 = inlined_call_operand.hbm [shape: f32[8,256], index: 1, kind: input, shape index: {}]
  %s2 = inlined_call_operand.vmem [shape: f32[8,1], index: 2, kind: output, shape index: {}]
  %s3 = sld [smem:[#allocation0]]
  $region26: #{tpu_custom_call.1} parent=0
    _
  %s5 = ssub.s32 1, %s3
  %s6 = scalar_select 0, %s5, %s3
  %7 = sst [smem:[#allocation4]] %s0
  $region1: #{tpu_custom_call.1} parent=0
    #allocation5 [shape = 'u8[8192]{0}', space=vmem, size = 0x2000, scoped, tag = 'input window, operand 1, single buffered']
    #allocation6 [shape = 's32[1]{0}', space=sflag, size = 0x4, scoped, tag = 'scoped memory for tpu_custom_call.1']
    %8 = vsyncpa [#allocation6], 0
    // Predicated region
    $region2: #{tpu_custom_call.1} parent=1 // pred_check
      _
    $region3: #{tpu_custom_call.1} parent=1 // pred_check_branch
      %10 = sbr.rel (0) target = $region5
    $region4: #{tpu_custom_call.1} parent=1 // pred_region
      %s12 = ssub.s32 256, 256
      %13 = vsyncadd [#allocation6], %s12
      %s15 = sshll.u32 [#allocation5], 4
      %s16 = int_to_ptr.vmem [resolvable:$true] %s15
      %18 = dma.hbm_to_vmem [thread:$0]  %s1, 256, %s16, [#allocation6]
    $region5: #{tpu_custom_call.1} parent=1 // pred_fallthru
      _
    // Predicated region
    $region6: #{tpu_custom_call.1} parent=1 // pred_check
      _
    $region7: #{tpu_custom_call.1} parent=1 // pred_check_branch
      %20 = sbr.rel (0) target = $region9
    $region8: #{tpu_custom_call.1} parent=1 // pred_region
      %21 = dma.done [#allocation6], 256
    $region9: #{tpu_custom_call.1} parent=1 // pred_fallthru
      _
    %p22 = scmp.eq.s32.totalorder 0, 0
    // Predicated region
    $region10: #{tpu_custom_call.1} parent=1 // pred_check
      %p23 = pneg %p22
    $region11: #{tpu_custom_call.1} parent=1 // pred_check_branch
      %25 = sbr.rel (%p23) target = $region13
    $region12: #{tpu_custom_call.1} parent=1 // pred_region
      %vm26 = vcmask 7168
      %27 = vst.msk [vmem:[#allocation2] sm:$0xff] %vm26, 0.0
    $region13: #{tpu_custom_call.1} parent=1 // pred_fallthru
      _
    %s28 = sld [smem:[#allocation4]]
    %v29 = vld [vmem:[#allocation5] sm:$0xff]
    %v30 = vld [vmem:[#allocation5 + $0x8] sm:$0xff]
    %v31 = vmax.f32 %v29, 1e-06
    %v32 = vmax.f32 %v30, 1e-06
    %v33 = vmin.f32 %v31, 1.0
    %v34 = vmin.f32 %v32, 1.0
    %v35 = vlog2.pop %v33
    %v36 = vmul.f32 %v35, 0.6931472
    %v37 = vlog2.pop %v34
    %v38 = vmul.f32 %v37, 0.6931472
    %v39 = vstv %s28
    %v40 = vmul.f32 %v39, %v36
    %v41 = vmul.f32 %v39, %v38
    %v42 = vmul.f32 %v40, 1.442695
    %v43 = vpow.pop %v42
    %v44 = vmul.f32 %v41, 1.442695
    %v45 = vpow.pop %v44
    %v46 = vld [vmem:[#allocation2] sm:$0xff]
    %v47 = vadd.f32 %v43, %v45
    %48 = vadd.xlane.f32.xlu0 %v47
    %v49 = vpop.xlane.xlu0 %48
    %v50 = vadd.f32 %v46, %v49
    %vm51 = vcmask 7168
    %52 = vst.msk [vmem:[#allocation2] sm:$0xff] %vm51, %v50
    // Predicated region
    $region14: #{tpu_custom_call.1} parent=1 // pred_check
      %p53 = pneg %p22
    $region15: #{tpu_custom_call.1} parent=1 // pred_check_branch
      %55 = sbr.rel (%p53) target = $region17
    $region16: #{tpu_custom_call.1} parent=1 // pred_region
      %v56 = vld [vmem:[#allocation2] sm:$0xff]
      %v57 = vmul.f32 %v56, 0.00390625
      %v58 = vstv %s28
      %v59 = vrcp.pop %v58
      %s60 = vtos %v59
      %v61 = vlog2.pop %v57
      %v62 = vmul.f32 %v61, 0.6931472
      %v63 = vstv %s60
      %v64 = vmul.f32 %v62, %v63
      %v65 = vmul.f32 %v64, 1.442695
      %v66 = vpow.pop %v65
      %67 = vst.msk [vmem:[%s2] sm:$0xff] %vm51, %v66
    $region17: #{tpu_custom_call.1} parent=1 // pred_fallthru
      _
    // Predicated region
    $region18: #{tpu_custom_call.1} parent=1 // pred_check
      _
    $region19: #{tpu_custom_call.1} parent=1 // pred_check_branch
      %69 = sbr.rel (0) target = $region21
    $region20: #{tpu_custom_call.1} parent=1 // pred_region
      _
    $region21: #{tpu_custom_call.1} parent=1 // pred_fallthru
      _
    // Predicated region
    $region22: #{tpu_custom_call.1} parent=1 // pred_check
      _
    $region23: #{tpu_custom_call.1} parent=1 // pred_check_branch
      %71 = sbr.rel (0) target = $region25
    $region24: #{tpu_custom_call.1} parent=1 // pred_region
      _
    $region25: #{tpu_custom_call.1} parent=1 // pred_fallthru
      _
    %72 = vsyncpa [#allocation6], 1

</llo_original>
